<compile_context>
chip_gen: v7x
topology: tpu7x:2x2x1
jax: 0.10.0
libtpu: 0.0.40
codegen_flags: <defaults>
</compile_context>

<pallas_src>
import functools

import jax
import jax.numpy as jnp
from jax.experimental import pallas as pl
from jax.experimental.pallas import tpu as pltpu

BN_EPS = 1e-5
_LANES = 128
_W_OFF = 8          # 8-aligned sublane offset of the interior inside the padded scratch


# ---------------------------------------------------------------------------
# pltpu.roll direction probe (expected to match np.roll; calibrated to be safe)
# ---------------------------------------------------------------------------
def _roll_probe_kernel(x_ref, o_ref):
    o_ref[...] = pltpu.roll(x_ref[...], 1, 0)


@functools.lru_cache(maxsize=1)
def _roll_sign():
    x = jnp.arange(8 * 128, dtype=jnp.float32).reshape(8, 128)
    out = pl.pallas_call(
        _roll_probe_kernel,
        out_shape=jax.ShapeDtypeStruct((8, 128), jnp.float32))(x)
    return 1 if bool(jnp.allclose(out, jnp.roll(x, 1, axis=0))) else -1


# ---------------------------------------------------------------------------
# Fused MBConv kernel (one grid step == one batch element)
# ---------------------------------------------------------------------------
def _mbconv_fused_kernel(x_cf_ref, wexp_ref, sh0_ref, dw_ref, sh1_ref,
                         sew1_ref, seb1_ref, sew2_ref, seb2_ref,
                         wproj_ref, sh2_ref, o_ref, pad_ref, *,
                         apply_abn0, k, stride, h, w, ho, wo, use_skip, roll_sign):
    c = wexp_ref.shape[1]                       # lane-padded channel count (mult of 128)
    hpad, wpad, _ = pad_ref.shape
    p = k // 2

    # ---- expand 1x1 conv (BN scale folded into weight) + shift + Swish --------------
    x_cf = x_cf_ref[0].astype(jnp.float32)                       # (CIN, H*W) channel-first
    x_cl = jnp.transpose(x_cf)                                   # (H*W, CIN) tiny transpose
    y = jnp.dot(x_cl, wexp_ref[...], preferred_element_type=jnp.float32)   # (H*W, C)
    if apply_abn0:
        y = y + sh0_ref[...]
        y = y * jax.nn.sigmoid(y)                                # abn0

    # ---- 'same' padding via VMEM scratch: zero only the halo, every step -------------
    if p > 0:
        pad_ref[0:p, :, :] = jnp.zeros((p, wpad, c), jnp.float32)
        pad_ref[p + h:hpad, :, :] = jnp.zeros((hpad - p - h, wpad, c), jnp.float32)
        pad_ref[p:p + h, 0:_W_OFF, :] = jnp.zeros((h, _W_OFF, c), jnp.float32)
        pad_ref[p:p + h, _W_OFF + w:wpad, :] = jnp.zeros(
            (h, wpad - _W_OFF - w, c), jnp.float32)
    pad_ref[p:p + h, _W_OFF:_W_OFF + w, :] = y.reshape(h, w, c)  # aligned interior store

    xp3 = pad_ref[...]                                           # (hpad, wpad, C)
    xp2 = xp3.reshape(hpad * wpad, c)                            # layout-trivial 2D view

    # ---- depthwise kxk conv (BN scale folded) + shift + Swish ------------------------
    # kw shifts are done with XLU rolls of the padded block so every slice is 8-aligned.
    acc = jnp.zeros((ho, wo, c), jnp.float32)
    for kw in range(k):
        d = kw - p
        if stride == 1:
            if d == 0:
                xs = xp3
            else:
                shift = (-d * roll_sign) % (hpad * wpad)
                xs = pltpu.roll(xp2, shift, 0).reshape(hpad, wpad, c)
            for kh in range(k):
                patch = xs[kh:kh + ho, _W_OFF:_W_OFF + wo, :]
                acc = acc + patch * dw_ref[kh * k + kw:kh * k + kw + 1, :]
        else:
            # TODO(synk): stride>1 keeps strided (possibly misaligned) sublane slices.
            c0 = _W_OFF + d
            for kh in range(k):
                patch = xp3[kh:kh + (ho - 1) * stride + 1:stride,
                            c0:c0 + (wo - 1) * stride + 1:stride, :]
                acc = acc + patch * dw_ref[kh * k + kw:kh * k + kw + 1, :]
    z = acc + sh1_ref[...]
    z = z * jax.nn.sigmoid(z)                                    # abn1
    z = z.reshape(ho * wo, c)

    # ---- squeeze-excite (1/(HO*WO) pooling scale folded into se_w1) ------------------
    pooled = jnp.sum(z, axis=0, keepdims=True)                   # (1, C)
    g = jnp.dot(pooled, sew1_ref[...], preferred_element_type=jnp.float32) + seb1_ref[...]
    g = jnp.maximum(g, 0.0)
    g = jnp.dot(g, sew2_ref[...], preferred_element_type=jnp.float32) + seb2_ref[...]
    g = jax.nn.sigmoid(g)
    z = z * g

    # ---- project 1x1: MXU-native matmul, then a small transpose for a lane-dense,
    #      channel-first (COUT, HO*WO) store ------------------------------------------
    out_cl = jnp.dot(z, wproj_ref[...], preferred_element_type=jnp.float32)  # (HW, COUT)
    out = jnp.transpose(out_cl)                                  # (COUT, HW)
    out = out + sh2_ref[...]
    out = out * jax.nn.sigmoid(out)                              # abn2 (module applies ABN)
    if use_skip:
        out = out + x_cf                                         # identity skip (channel-first)
    o_ref[0] = out.astype(o_ref.dtype)


# ---------------------------------------------------------------------------
# Host-side folding + pallas_call wrapper
# ---------------------------------------------------------------------------
def _bn_fold(bn):
    gamma, beta, mean, var = bn
    scale = gamma * jax.lax.rsqrt(var + BN_EPS)
    shift = beta - mean * scale
    return scale, shift


def _pad_cols(a, c):
    return jnp.pad(a, ((0, 0), (0, c - a.shape[1])))


def _pad_rows(a, c):
    return jnp.pad(a, ((0, c - a.shape[0]), (0, 0)))


def mbconv_forward(x_nchw, params, cfg):
    n, cin, h, w = x_nchw.shape
    er, k, s = cfg["expand_ratio"], cfg["kernel_size"], cfg["stride"]
    oup = cin * er
    cout = params["proj_w"].shape[1]
    se = params["se_w1"].shape[1]
    p = k // 2
    ho = (h + 2 * p - k) // s + 1
    wo = (w + 2 * p - k) // s + 1
    use_skip = bool(cfg["id_skip"] and s == 1 and cin == cout)

    # Lane-pad the expanded channel dim to a multiple of 128; padded channels stay 0.
    c = ((oup + _LANES - 1) // _LANES) * _LANES

    if er != 1:
        scale0, shift0 = _bn_fold(params["abn0"])
        w_exp = _pad_cols(params["expand_w"] * scale0[None, :], c)        # (CIN, C)
        sh0 = _pad_cols(shift0.reshape(1, oup), c)
        apply_abn0 = True
    else:
        # Expand is identity; route it through a tiny identity matmul so the depthwise
        # path still sees the lane-padded channels-last layout.
        w_exp = _pad_cols(jnp.eye(cin, dtype=jnp.float32), c)
        sh0 = jnp.zeros((1, c), jnp.float32)
        apply_abn0 = False

    scale1, shift1 = _bn_fold(params["abn1"])
    dw_w = _pad_cols(params["dw_w"] * scale1[None, :], c)                 # (K*K, C)
    sh1 = _pad_cols(shift1.reshape(1, oup), c)

    se_w1 = _pad_rows(params["se_w1"] * (1.0 / float(ho * wo)), c)        # (C, SE)
    se_b1 = params["se_b1"]                                               # (1, SE)
    se_w2 = _pad_cols(params["se_w2"], c)                                 # (SE, C)
    se_b2 = _pad_cols(params["se_b2"], c)                                 # (1, C)

    scale2, shift2 = _bn_fold(params["abn2"])
    w_proj = _pad_rows(params["proj_w"] * scale2[None, :], c)             # (C, COUT)
    sh2 = shift2.reshape(cout, 1)

    hw = h * w
    x_cf = x_nchw.reshape(n, cin, hw)                     # single channel-first input copy

    hpad = h + 2 * p
    wpad = _W_OFF + ((w + p + 7) // 8) * 8                # explicit multiple-of-8 width
    roll_sign = _roll_sign() if (s == 1 and k > 1) else 1

    kern = functools.partial(
        _mbconv_fused_kernel, apply_abn0=apply_abn0, k=k, stride=s, h=h, w=w,
        ho=ho, wo=wo, use_skip=use_skip, roll_sign=roll_sign)

    full2d = lambda b: (0, 0)
    out = pl.pallas_call(
        kern,
        out_shape=jax.ShapeDtypeStruct((n, cout, ho * wo), x_nchw.dtype),
        grid=(n,),
        in_specs=[
            pl.BlockSpec((1, cin, hw), lambda b: (b, 0, 0)),   # x channel-first (only input)
            pl.BlockSpec((cin, c), full2d),                    # expand weight (BN-folded)
            pl.BlockSpec((1, c), full2d),                      # abn0 shift
            pl.BlockSpec((k * k, c), full2d),                  # depthwise taps (BN-folded)
            pl.BlockSpec((1, c), full2d),                      # abn1 shift
            pl.BlockSpec((c, se), full2d),                     # SE fc1 weight (pool folded)
            pl.BlockSpec((1, se), full2d),                     # SE fc1 bias
            pl.BlockSpec((se, c), full2d),                     # SE fc2 weight
            pl.BlockSpec((1, c), full2d),                      # SE fc2 bias
            pl.BlockSpec((c, cout), full2d),                   # project weight (BN-folded)
            pl.BlockSpec((cout, 1), full2d),                   # abn2 shift (channel-first)
        ],
        out_specs=pl.BlockSpec((1, cout, ho * wo), lambda b: (b, 0, 0)),
        scratch_shapes=[pltpu.VMEM((hpad, wpad, c), jnp.float32)],
        compiler_params=pltpu.CompilerParams(dimension_semantics=("parallel",)),
    )(x_cf, w_exp, sh0, dw_w, sh1, se_w1, se_b1, se_w2, se_b2, w_proj, sh2)

    return out.reshape(n, cout, ho, wo)                        # already NCHW


# ---------------------------------------------------------------------------
# Pure-JAX reference (for sanity check)
# ---------------------------------------------------------------------------
def mbconv_reference(x_nchw, params, cfg):
    hi = jax.lax.Precision.HIGHEST
    er, k, s = cfg["expand_ratio"], cfg["kernel_size"], cfg["stride"]
    x = jnp.transpose(x_nchw, (0, 2, 3, 1))
    identity = x
    n, h, w, cin = x.shape

    def bn_swish(z, bn):
        gamma, beta, mean, var = bn
        z = (z - mean) / jnp.sqrt(var + BN_EPS) * gamma + beta
        return z * jax.nn.sigmoid(z)

    if er != 1:
        x = jnp.einsum("nhwc,cd->nhwd", x, params["expand_w"], precision=hi)
        x = bn_swish(x, params["abn0"])

    p = k // 2
    ho = (h + 2 * p - k) // s + 1
    wo = (w + 2 * p - k) // s + 1
    xp = jnp.pad(x, ((0, 0), (p, p), (p, p), (0, 0)))
    out = jnp.zeros((n, ho, wo, x.shape[-1]), jnp.float32)
    for kh in range(k):
        for kw in range(k):
            patch = xp[:, kh:kh + (ho - 1) * s + 1:s, kw:kw + (wo - 1) * s + 1:s, :]
            out = out + patch * params["dw_w"][kh * k + kw]
    x = bn_swish(out, params["abn1"])

    pooled = jnp.mean(x, axis=(1, 2))                            # (N, C)
    g = jnp.maximum(pooled @ params["se_w1"] + params["se_b1"][0], 0.0)
    g = jax.nn.sigmoid(g @ params["se_w2"] + params["se_b2"][0])
    x = x * g[:, None, None, :]

    x = jnp.einsum("nhwc,cd->nhwd", x, params["proj_w"], precision=hi)
    x = bn_swish(x, params["abn2"])
    if cfg["id_skip"] and s == 1 and cin == params["proj_w"].shape[1]:
        x = x + identity
    return jnp.transpose(x, (0, 3, 1, 2))


# ---------------------------------------------------------------------------
# Main
# ---------------------------------------------------------------------------
if __name__ == "__main__":
    # Canonical EfficientNet repeated block: in == out, stride 1 -> identity skip.
    cfg = dict(in_channels=16, out_channels=16, expand_ratio=6, kernel_size=3,
               stride=1, se_reduction=4, id_skip=True)
    N, CIN, H, W = 2, cfg["in_channels"], 16, 16
    OUP = CIN * cfg["expand_ratio"]
    SE = max(1, CIN // cfg["se_reduction"])
    COUT = cfg["out_channels"]
    K = cfg["kernel_size"]

    key = jax.random.PRNGKey(0)
    ks = jax.random.split(key, 20)

    def nrm(k_, shape, sc=0.1):
        return (jax.random.normal(k_, shape, jnp.float32) * sc).astype(jnp.float32)

    def bn_params(k_, c):
        k1, k2, k3, k4 = jax.random.split(k_, 4)
        gamma = 1.0 + nrm(k1, (c,), 0.05)
        beta = nrm(k2, (c,), 0.05)
        mean = nrm(k3, (c,), 0.05)
        var = 1.0 + jnp.abs(nrm(k4, (c,), 0.1))
        return (gamma, beta, mean, var)

    params = {
        "expand_w": nrm(ks[0], (CIN, OUP)),
        "abn0": bn_params(ks[1], OUP),
        "dw_w": nrm(ks[2], (K * K, OUP)),
        "abn1": bn_params(ks[3], OUP),
        "se_w1": nrm(ks[4], (OUP, SE)),
        "se_b1": nrm(ks[5], (1, SE)),
        "se_w2": nrm(ks[6], (SE, OUP)),
        "se_b2": nrm(ks[7], (1, OUP)),
        "proj_w": nrm(ks[8], (OUP, COUT)),
        "abn2": bn_params(ks[9], COUT),
    }

    x = jax.random.normal(ks[10], (N, CIN, H, W), jnp.float32)

    out = jax.block_until_ready(mbconv_forward(x, params, cfg))
    ref = jax.block_until_ready(mbconv_reference(x, params, cfg))

    assert out.shape == (N, COUT, H, W), out.shape
    assert jnp.all(jnp.isfinite(out))
    assert jnp.allclose(out, ref, atol=1e-2, rtol=1e-2), float(jnp.max(jnp.abs(out - ref)))
    print("KERNEL_OK")
</pallas_src>

<mosaic_0001>
module attributes {stable_mosaic.version = 11 : i64} {
  func.func @_roll_probe_kernel(%arg0: memref<8x128xf32, #tpu.memory_space<vmem>>, %arg1: memref<8x128xf32, #tpu.memory_space<vmem>>) attributes {dimension_semantics = [], scalar_prefetch = 0 : i64, scratch_operands = 0 : i64, tpu.core_type = #tpu.core_type<tc>} {
    %c0 = arith.constant 0 : index
    %c0_0 = arith.constant 0 : index
    %0 = vector.load %arg0[%c0, %c0_0] : memref<8x128xf32, #tpu.memory_space<vmem>>, vector<8x128xf32>
    %c1_i32 = arith.constant 1 : i32
    %1 = tpu.dynamic_rotate %0 by %c1_i32 dim 0 : vector<8x128xf32>, i32 -> vector<8x128xf32>
    %c0_1 = arith.constant 0 : index
    %c0_2 = arith.constant 0 : index
    %2 = vector.load %arg1[%c0_1, %c0_2] : memref<8x128xf32, #tpu.memory_space<vmem>>, vector<8x128xf32>
    tpu.vector_store %arg1[%c0_1, %c0_2], %1 {strides = array<i32>} : memref<8x128xf32, #tpu.memory_space<vmem>>, vector<8x128xf32>,
    return
  }
}

</mosaic_0001>

<llo_original>
// kernel: tpu_custom_call.1
$region0: #{tpu_custom_call.1}
  #allocation0 [shape = 'u32[]', space=smem, size = 0x4, offset = 0x4, fixed_abs, tag = 'smem constant byte address 0x4 - core index']
  #allocation1 [shape = 'u32[144,128]{1,0:T(1,128)}', space=vmem, size = 0x12000, scoped, tag = 'internal scratch']
  %s0 = inlined_call_operand.hbm [shape: f32[8,128], index: 0, kind: input, shape index: {}]
  %s1 = inlined_call_operand.hbm [shape: f32[8,128], index: 1, kind: output, shape index: {}]
  %s2 = sld [smem:[#allocation0]]
  $region18: #{tpu_custom_call.1} parent=0
    _
  %s4 = ssub.s32 1, %s2
  %s5 = scalar_select 0, %s4, %s2
  $region1: #{tpu_custom_call.1} parent=0
    #allocation2 [shape = 'u8[4096]{0}', space=vmem, size = 0x1000, scoped, tag = 'input window, operand 0, single buffered']
    #allocation3 [shape = 's32[1]{0}', space=sflag, size = 0x4, scoped, tag = 'scoped memory for tpu_custom_call.1']
    #allocation4 [shape = 's32[1]{0}', space=sflag, size = 0x4, scoped, tag = 'scoped memory for tpu_custom_call.1']
    #allocation5 [shape = 'u8[4096]{0}', space=vmem, size = 0x1000, scoped, tag = 'output window, operand 0, single buffered']
    %6 = vsyncpa [#allocation3], 0
    %7 = vsyncpa [#allocation4], 0
    // Predicated region
    $region2: #{tpu_custom_call.1} parent=1 // pred_check
      _
    $region3: #{tpu_custom_call.1} parent=1 // pred_check_branch
      %9 = sbr.rel (0) target = $region5
    $region4: #{tpu_custom_call.1} parent=1 // pred_region
      %s11 = ssub.s32 128, 128
      %12 = vsyncadd [#allocation3], %s11
      %s14 = sshll.u32 [#allocation2], 4
      %s15 = int_to_ptr.vmem [resolvable:$true] %s14
      %17 = dma.hbm_to_vmem [thread:$0]  %s0, 128, %s15, [#allocation3]
    $region5: #{tpu_custom_call.1} parent=1 // pred_fallthru
      _
    // Predicated region
    $region6: #{tpu_custom_call.1} parent=1 // pred_check
      _
    $region7: #{tpu_custom_call.1} parent=1 // pred_check_branch
      %19 = sbr.rel (0) target = $region9
    $region8: #{tpu_custom_call.1} parent=1 // pred_region
      %20 = dma.done [#allocation3], 128
    $region9: #{tpu_custom_call.1} parent=1 // pred_fallthru
      _
    %v21 = vld [vmem:[#allocation2] sm:$0xff]
    %v22 = vrot.slane %v21, 7
    %23 = vst [vmem:[#allocation5] sm:$0xff] %v22
    // Predicated region
    $region10: #{tpu_custom_call.1} parent=1 // pred_check
      _
    $region11: #{tpu_custom_call.1} parent=1 // pred_check_branch
      %25 = sbr.rel (0) target = $region13
    $region12: #{tpu_custom_call.1} parent=1 // pred_region
      %s27 = ssub.s32 128, 128
      %28 = vsyncadd [#allocation4], %s27
      %s30 = sshll.u32 [#allocation5], 4
      %s31 = int_to_ptr.vmem [resolvable:$true] %s30
      %33 = dma.vmem_to_hbm [thread:$0]  %s31, 128, %s1, [#allocation4]
    $region13: #{tpu_custom_call.1} parent=1 // pred_fallthru
      _
    // Predicated region
    $region14: #{tpu_custom_call.1} parent=1 // pred_check
      _
    $region15: #{tpu_custom_call.1} parent=1 // pred_check_branch
      %35 = sbr.rel (0) target = $region17
    $region16: #{tpu_custom_call.1} parent=1 // pred_region
      %36 = dma.done [#allocation4], 128
    $region17: #{tpu_custom_call.1} parent=1 // pred_fallthru
      _
    %37 = vsyncpa [#allocation3], 1
    %38 = vsyncpa [#allocation4], 1

</llo_original>
